<compile_context>
chip_gen: v6e
topology: v6e:2x2x1
jax: 0.10.0
libtpu: 0.0.40
codegen_flags: <defaults>
</compile_context>

<pallas_src>
import functools
import itertools

import numpy as np
import jax
import jax.numpy as jnp
from jax.experimental import pallas as pl
from jax.experimental.pallas import tpu as pltpu


def _round_up(x, m):
    return ((x + m - 1) // m) * m


def _cost_matrix_kernel(logits_ref, pfeat_ref, onehot_ref, tfeat_ref, out_ref,
                        *, w_pos, w_neg, cost_bbox, cost_giou):
    # logits_ref : [tile_n, C]      prediction logits (native dtype, cast to f32 here)
    # pfeat_ref  : [tile_n, 8]      prediction box features (cx, cy, w, h, x0, y0, x1, y1)
    # onehot_ref : [C, tile_t]      one-hot of target class ids (padded cols are zero)
    # tfeat_ref  : [8, tile_t]      target box features, transposed (padded cols are zero)
    # out_ref    : [tile_n, tile_t] pairwise matching cost

    # ---- focal classification cost (gamma == 2; cost_class folded into w_pos / w_neg) -----
    x = logits_ref[...].astype(jnp.float32)
    e = jnp.exp(-jnp.abs(x))                       # exp(-|x|) in (0, 1]
    inv = 1.0 / (1.0 + e)
    p = jnp.where(x >= 0.0, inv, 1.0 - inv)        # sigmoid(x), stable
    log_p = jnp.minimum(x, 0.0) - jnp.log(1.0 + e)  # log(sigmoid(x)), no -inf for extreme x
    log_1mp = log_p - x                             # log(1 - sigmoid(x)) via log-sigmoid identity
    q = 1.0 - p
    # pos - neg focal terms, already scaled by cost_class
    cls_w = w_pos * (q * q) * (-log_p) + w_neg * (p * p) * log_1mp
    # gather over target class ids == matmul with zero-padded one-hot  -> [tile_n, tile_t]
    acc = jnp.dot(cls_w, onehot_ref[...],
                  preferred_element_type=jnp.float32,
                  precision=jax.lax.Precision.HIGHEST)

    # ---- extract box coordinates once, reuse for L1 + GIoU ---------------------------------
    pf = pfeat_ref[...].astype(jnp.float32)
    tf = tfeat_ref[...].astype(jnp.float32)
    pcx, pcy, pw, ph = pf[:, 0:1], pf[:, 1:2], pf[:, 2:3], pf[:, 3:4]          # [tile_n, 1]
    px0, py0, px1, py1 = pf[:, 4:5], pf[:, 5:6], pf[:, 6:7], pf[:, 7:8]
    tcx, tcy, tw, th = tf[0:1, :], tf[1:2, :], tf[2:3, :], tf[3:4, :]          # [1, tile_t]
    tx0, ty0, tx1, ty1 = tf[4:5, :], tf[5:6, :], tf[6:7, :], tf[7:8, :]

    # ---- L1 box cost (cdist, p=1, on cxcywh), accumulated immediately ----------------------
    cb = (jnp.abs(pcx - tcx) + jnp.abs(pcy - tcy)
          + jnp.abs(pw - tw) + jnp.abs(ph - th))                               # [tile_n, tile_t]
    acc = acc + cost_bbox * cb

    # ---- generalized IoU cost ---------------------------------------------------------------
    area_o = pw * ph                                                           # [tile_n, 1]
    area_t = tw * th                                                           # [1, tile_t]

    iw = jnp.maximum(jnp.minimum(px1, tx1) - jnp.maximum(px0, tx0), 0.0)       # [tile_n, tile_t]
    ih = jnp.maximum(jnp.minimum(py1, ty1) - jnp.maximum(py0, ty0), 0.0)
    inter = iw * ih
    union = area_o + area_t - inter
    # approx reciprocal (EUP) + one Newton step -> ~1e-6 relative accuracy
    inv_u = pl.reciprocal(union, approx=True)
    inv_u = inv_u * (2.0 - union * inv_u)
    iou = inter * inv_u

    # enclosing-box extents are non-negative for well-formed (x1 >= x0) boxes: no clamp needed
    ew = jnp.maximum(px1, tx1) - jnp.minimum(px0, tx0)
    eh = jnp.maximum(py1, ty1) - jnp.minimum(py0, ty0)
    enc = ew * eh
    inv_e = pl.reciprocal(enc, approx=True)
    inv_e = inv_e * (2.0 - enc * inv_e)
    giou = iou - (enc - union) * inv_e

    acc = acc - cost_giou * giou
    out_ref[...] = acc.astype(out_ref.dtype)


def _cxcywh_to_feat(b):
    """[..., 4] cxcywh -> [..., 8] (cx, cy, w, h, x0, y0, x1, y1)."""
    cx, cy, w, h = b[..., 0], b[..., 1], b[..., 2], b[..., 3]
    return jnp.stack([cx, cy, w, h,
                      cx - 0.5 * w, cy - 0.5 * h,
                      cx + 0.5 * w, cy + 0.5 * h], axis=-1)


def pairwise_cost_matrix(pred_logits, pred_boxes, tgt_ids, tgt_bbox,
                         cost_class=1.0, cost_bbox=1.0, cost_giou=1.0,
                         tile_n=512, tile_t=512):
    """Returns C of shape [bs, num_queries, total_num_targets] (float32)."""
    bs, nq, num_classes = pred_logits.shape
    N = bs * nq
    T = int(tgt_ids.shape[0])

    # ---- tile sizing (N sublane-aligned; T lane-dense multiple of 128) ----------------------
    tile_n = min(tile_n, _round_up(N, 8))
    N_pad = _round_up(N, tile_n)
    T_pad0 = _round_up(max(T, 1), 128)
    tile_t = min(tile_t, T_pad0)
    T_pad = _round_up(T_pad0, tile_t)

    # Logits stay in native dtype and native class width; pad along N only when necessary
    # (the kernel casts to f32 itself, so no extra HBM pass for the largest input).
    logits = pred_logits.reshape(N, num_classes)
    pfeat = _cxcywh_to_feat(pred_boxes.reshape(N, 4).astype(jnp.float32))      # [N, 8]
    if N_pad != N:
        logits = jnp.pad(logits, ((0, N_pad - N), (0, 0)))
        pfeat = jnp.pad(pfeat, ((0, N_pad - N), (0, 0)))

    onehot = jax.nn.one_hot(tgt_ids, num_classes, dtype=jnp.float32)           # [T, C]
    onehot = jnp.pad(onehot, ((0, T_pad - T), (0, 0))).T                       # [C, T_pad]

    tfeat = _cxcywh_to_feat(tgt_bbox.astype(jnp.float32))                      # [T, 8]
    tfeat = jnp.pad(tfeat, ((0, T_pad - T), (0, 0))).T                         # [8, T_pad]

    alpha = 0.25
    kernel = functools.partial(
        _cost_matrix_kernel,
        w_pos=float(cost_class) * alpha,
        w_neg=float(cost_class) * (1.0 - alpha),
        cost_bbox=float(cost_bbox),
        cost_giou=float(cost_giou))

    # Per-step VMEM working set: double-buffered operands + ~12 live [tile_n, tile_t] f32 temps.
    bpe = np.dtype(logits.dtype).itemsize
    est = (2 * (tile_n * num_classes * bpe + tile_n * 8 * 4
                + num_classes * tile_t * 4 + 8 * tile_t * 4
                + tile_n * tile_t * 4)
           + 12 * tile_n * tile_t * 4)
    # Clamp to [32 MiB, 64 MiB]: covers v5e's 16 MiB scoped default, safe on v7x's 64 MiB VMEM.
    vmem_limit = int(min(64 * 1024 * 1024, max(32 * 1024 * 1024, 2 * est)))

    c_flat = pl.pallas_call(
        kernel,
        out_shape=jax.ShapeDtypeStruct((N_pad, T_pad), jnp.float32),
        grid=(N_pad // tile_n, T_pad // tile_t),
        in_specs=[
            pl.BlockSpec((tile_n, num_classes), lambda i, j: (i, 0)),  # logits tile (full C)
            pl.BlockSpec((tile_n, 8), lambda i, j: (i, 0)),            # pred box features tile
            pl.BlockSpec((num_classes, tile_t), lambda i, j: (0, j)),  # one-hot target tile
            pl.BlockSpec((8, tile_t), lambda i, j: (0, j)),            # target box features tile
        ],
        out_specs=pl.BlockSpec((tile_n, tile_t), lambda i, j: (i, j)),
        compiler_params=pltpu.CompilerParams(
            dimension_semantics=("parallel", "parallel"),
            vmem_limit_bytes=vmem_limit),
    )(logits, pfeat, onehot, tfeat)

    # Padded rows/columns may contain garbage; slice them off before use.
    return c_flat[:N, :T].reshape(bs, nq, T)


def _linear_sum_assignment_bruteforce(cost):
    # TODO(synk): exact Hungarian (scipy.linear_sum_assignment) is sequential/data-dependent;
    # solved on host via exact brute force (valid for the small demo sizes used here).
    nq, nt = cost.shape
    best_perm, best_val = None, np.inf
    cols = list(range(nt))
    for perm in itertools.permutations(range(nq), nt):
        val = cost[list(perm), cols].sum()
        if val < best_val:
            best_val, best_perm = val, perm
    pairs = sorted(zip(best_perm, cols))
    rows = np.array([p[0] for p in pairs], dtype=np.int64)
    sel_cols = np.array([p[1] for p in pairs], dtype=np.int64)
    return rows, sel_cols


def hungarian_matcher(outputs, targets, cost_class=1.0, cost_bbox=1.0, cost_giou=1.0):
    """JAX/Pallas equivalent of HungarianMatcher.forward.

    outputs: dict with 'pred_logits' [bs, nq, num_classes], 'pred_boxes' [bs, nq, 4]
    targets: list of dicts with 'labels' [nt_b] int32, 'boxes' [nt_b, 4]
    Returns list of (index_i, index_j) numpy int64 arrays.
    """
    tgt_ids = jnp.concatenate([t['labels'] for t in targets])
    tgt_bbox = jnp.concatenate([t['boxes'] for t in targets])
    sizes = [int(t['boxes'].shape[0]) for t in targets]

    C = pairwise_cost_matrix(outputs['pred_logits'], outputs['pred_boxes'],
                             tgt_ids, tgt_bbox, cost_class, cost_bbox, cost_giou)
    C_np = np.asarray(jax.block_until_ready(C))

    indices, start = [], 0
    for b, sz in enumerate(sizes):
        sub = C_np[b, :, start:start + sz]
        indices.append(_linear_sum_assignment_bruteforce(sub))
        start += sz
    return indices


def _reference_cost_numpy(pred_logits, pred_boxes, tgt_ids, tgt_bbox,
                          cost_class=1.0, cost_bbox=1.0, cost_giou=1.0):
    """Pure-numpy reference of the DETR cost matrix (for validation)."""
    bs, nq, nc = pred_logits.shape
    logits = np.asarray(pred_logits, np.float32).reshape(bs * nq, nc)
    out_bbox = np.asarray(pred_boxes, np.float32).reshape(bs * nq, 4)
    tgt_ids = np.asarray(tgt_ids)
    tgt_bbox = np.asarray(tgt_bbox, np.float32)
    p = 1.0 / (1.0 + np.exp(-logits))
    alpha, gamma = 0.25, 2.0
    neg = (1 - alpha) * p ** gamma * -np.log(1 - p + 1e-8)
    pos = alpha * (1 - p) ** gamma * -np.log(p + 1e-8)
    cc = pos[:, tgt_ids] - neg[:, tgt_ids]
    cb = np.abs(out_bbox[:, None, :] - tgt_bbox[None, :, :]).sum(-1)

    def to_xyxy(b):
        cx, cy, w, h = b[:, 0], b[:, 1], b[:, 2], b[:, 3]
        return np.stack([cx - 0.5 * w, cy - 0.5 * h, cx + 0.5 * w, cy + 0.5 * h], -1)

    b1, b2 = to_xyxy(out_bbox), to_xyxy(tgt_bbox)
    a1 = (b1[:, 2] - b1[:, 0]) * (b1[:, 3] - b1[:, 1])
    a2 = (b2[:, 2] - b2[:, 0]) * (b2[:, 3] - b2[:, 1])
    lt = np.maximum(b1[:, None, :2], b2[None, :, :2])
    rb = np.minimum(b1[:, None, 2:], b2[None, :, 2:])
    wh = np.clip(rb - lt, 0, None)
    inter = wh[..., 0] * wh[..., 1]
    union = a1[:, None] + a2[None, :] - inter
    iou = inter / union
    ltE = np.minimum(b1[:, None, :2], b2[None, :, :2])
    rbE = np.maximum(b1[:, None, 2:], b2[None, :, 2:])
    whE = np.clip(rbE - ltE, 0, None)
    enc = whE[..., 0] * whE[..., 1]
    giou = iou - (enc - union) / enc
    C = cost_bbox * cb + cost_class * cc + cost_giou * (-giou)
    return C.reshape(bs, nq, -1)


if __name__ == "__main__":
    key = jax.random.PRNGKey(0)
    bs, num_queries, num_classes = 2, 8, 32
    sizes = [3, 4]

    k1, k2, k3, k4, k5 = jax.random.split(key, 5)
    pred_logits = jax.random.normal(k1, (bs, num_queries, num_classes), jnp.float32)
    # well-formed cxcywh boxes in [0, 1]
    pc = jax.random.uniform(k2, (bs, num_queries, 2), minval=0.25, maxval=0.75)
    pwh = jax.random.uniform(k3, (bs, num_queries, 2), minval=0.1, maxval=0.3)
    pred_boxes = jnp.concatenate([pc, pwh], axis=-1)

    targets = []
    tk = jax.random.split(k4, len(sizes))
    bk = jax.random.split(k5, len(sizes))
    for b, sz in enumerate(sizes):
        labels = jax.random.randint(tk[b], (sz,), 0, num_classes, dtype=jnp.int32)
        tc = jax.random.uniform(bk[b], (sz, 2), minval=0.25, maxval=0.75)
        twh = jax.random.uniform(jax.random.fold_in(bk[b], 1), (sz, 2), minval=0.1, maxval=0.3)
        targets.append({"labels": labels, "boxes": jnp.concatenate([tc, twh], axis=-1)})

    outputs = {"pred_logits": pred_logits, "pred_boxes": pred_boxes}

    # Run the Pallas kernel (cost matrix) + host assignment.
    indices = hungarian_matcher(outputs, targets)

    # Validate the kernel's cost matrix against the pure-numpy reference.
    tgt_ids = jnp.concatenate([t["labels"] for t in targets])
    tgt_bbox = jnp.concatenate([t["boxes"] for t in targets])
    C_kernel = jax.block_until_ready(
        pairwise_cost_matrix(pred_logits, pred_boxes, tgt_ids, tgt_bbox))
    C_ref = _reference_cost_numpy(pred_logits, pred_boxes, tgt_ids, tgt_bbox)
    np.testing.assert_allclose(np.asarray(C_kernel), C_ref, rtol=1e-4, atol=1e-4)

    # Sanity: each batch produced min(num_queries, num_targets) matched pairs.
    for (i_idx, j_idx), sz in zip(indices, sizes):
        assert len(i_idx) == len(j_idx) == min(num_queries, sz)
        assert i_idx.dtype == np.int64 and j_idx.dtype == np.int64

    print("KERNEL_OK")
</pallas_src>

<mosaic_0001>
module attributes {stable_mosaic.version = 11 : i64} {
  func.func @_cost_matrix_kernel(%arg0: i32, %arg1: i32, %arg2: memref<16x32xf32, #tpu.memory_space<vmem>>, %arg3: memref<16x8xf32, #tpu.memory_space<vmem>>, %arg4: memref<32x128xf32, #tpu.memory_space<vmem>>, %arg5: memref<8x128xf32, #tpu.memory_space<vmem>>, %arg6: memref<16x128xf32, #tpu.memory_space<vmem>>) attributes {dimension_semantics = [#tpu.dimension_semantics<parallel>, #tpu.dimension_semantics<parallel>], iteration_bounds = array<i64: 1, 1>, scalar_prefetch = 0 : i64, scratch_operands = 0 : i64, tpu.core_type = #tpu.core_type<tc>, window_params = [{transform_indices = @transform_0, window_bounds = array<i64: 16, 32>}, {transform_indices = @transform_1, window_bounds = array<i64: 16, 8>}, {transform_indices = @transform_2, window_bounds = array<i64: 32, 128>}, {transform_indices = @transform_3, window_bounds = array<i64: 8, 128>}, {transform_indices = @transform_4, window_bounds = array<i64: 16, 128>}]} {
    %c0 = arith.constant 0 : index
    %c0_0 = arith.constant 0 : index
    %0 = vector.load %arg2[%c0, %c0_0] : memref<16x32xf32, #tpu.memory_space<vmem>>, vector<16x32xf32>
    %1 = math.absf %0 : vector<16x32xf32>
    %cst = arith.constant 0.000000e+00 : f32
    %2 = vector.broadcast %cst : f32 to vector<16x32xf32>
    %3 = arith.subf %2, %1 : vector<16x32xf32>
    %4 = math.exp %3 : vector<16x32xf32>
    %cst_1 = arith.constant 1.000000e+00 : f32
    %5 = vector.broadcast %cst_1 : f32 to vector<16x32xf32>
    %6 = arith.addf %5, %4 : vector<16x32xf32>
    %cst_2 = arith.constant 1.000000e+00 : f32
    %7 = vector.broadcast %cst_2 : f32 to vector<16x32xf32>
    %8 = arith.divf %7, %6 : vector<16x32xf32>
    %cst_3 = arith.constant 0.000000e+00 : f32
    %9 = vector.broadcast %cst_3 : f32 to vector<16x32xf32>
    %10 = arith.cmpf oge, %0, %9 : vector<16x32xf32>
    %cst_4 = arith.constant 1.000000e+00 : f32
    %11 = vector.broadcast %cst_4 : f32 to vector<16x32xf32>
    %12 = arith.subf %11, %8 : vector<16x32xf32>
    %13 = arith.select %10, %8, %12 : vector<16x32xi1>, vector<16x32xf32>
    %cst_5 = arith.constant 0.000000e+00 : f32
    %14 = vector.broadcast %cst_5 : f32 to vector<16x32xf32>
    %15 = arith.minimumf %0, %14 : vector<16x32xf32>
    %cst_6 = arith.constant 1.000000e+00 : f32
    %16 = vector.broadcast %cst_6 : f32 to vector<16x32xf32>
    %17 = arith.addf %16, %4 : vector<16x32xf32>
    %18 = math.log %17 : vector<16x32xf32>
    %19 = arith.subf %15, %18 : vector<16x32xf32>
    %20 = arith.subf %19, %0 : vector<16x32xf32>
    %cst_7 = arith.constant 1.000000e+00 : f32
    %21 = vector.broadcast %cst_7 : f32 to vector<16x32xf32>
    %22 = arith.subf %21, %13 : vector<16x32xf32>
    %23 = arith.mulf %22, %22 : vector<16x32xf32>
    %cst_8 = arith.constant 2.500000e-01 : f32
    %24 = vector.broadcast %cst_8 : f32 to vector<16x32xf32>
    %25 = arith.mulf %24, %23 : vector<16x32xf32>
    %cst_9 = arith.constant 0.000000e+00 : f32
    %26 = vector.broadcast %cst_9 : f32 to vector<16x32xf32>
    %27 = arith.subf %26, %19 : vector<16x32xf32>
    %28 = arith.mulf %25, %27 : vector<16x32xf32>
    %29 = arith.mulf %13, %13 : vector<16x32xf32>
    %cst_10 = arith.constant 7.500000e-01 : f32
    %30 = vector.broadcast %cst_10 : f32 to vector<16x32xf32>
    %31 = arith.mulf %30, %29 : vector<16x32xf32>
    %32 = arith.mulf %31, %20 : vector<16x32xf32>
    %33 = arith.addf %28, %32 : vector<16x32xf32>
    %c0_11 = arith.constant 0 : index
    %c0_12 = arith.constant 0 : index
    %34 = vector.load %arg4[%c0_11, %c0_12] : memref<32x128xf32, #tpu.memory_space<vmem>>, vector<32x128xf32>
    %cst_13 = arith.constant dense<0.000000e+00> : vector<16x128xf32>
    %35 = tpu.matmul %33, %34, %cst_13 {dimension_numbers = #tpu.dot_dimension_numbers<[1], [0], [0], [1], [0, 0, 1, 1], [], []>, precision = #tpu.contract_precision<fp32>} : vector<16x32xf32>, vector<32x128xf32>, vector<16x128xf32> -> vector<16x128xf32>
    %c0_14 = arith.constant 0 : index
    %c0_15 = arith.constant 0 : index
    %36 = vector.load %arg3[%c0_14, %c0_15] : memref<16x8xf32, #tpu.memory_space<vmem>>, vector<16x8xf32>
    %c0_16 = arith.constant 0 : index
    %c0_17 = arith.constant 0 : index
    %37 = vector.load %arg5[%c0_16, %c0_17] : memref<8x128xf32, #tpu.memory_space<vmem>>, vector<8x128xf32>
    %38 = vector.extract_strided_slice %36 {offsets = [0, 0], sizes = [16, 1], strides = [1, 1]} : vector<16x8xf32> to vector<16x1xf32>
    %39 = vector.extract_strided_slice %36 {offsets = [0, 1], sizes = [16, 1], strides = [1, 1]} : vector<16x8xf32> to vector<16x1xf32>
    %40 = vector.extract_strided_slice %36 {offsets = [0, 2], sizes = [16, 1], strides = [1, 1]} : vector<16x8xf32> to vector<16x1xf32>
    %41 = vector.extract_strided_slice %36 {offsets = [0, 3], sizes = [16, 1], strides = [1, 1]} : vector<16x8xf32> to vector<16x1xf32>
    %42 = vector.extract_strided_slice %36 {offsets = [0, 4], sizes = [16, 1], strides = [1, 1]} : vector<16x8xf32> to vector<16x1xf32>
    %43 = vector.extract_strided_slice %36 {offsets = [0, 5], sizes = [16, 1], strides = [1, 1]} : vector<16x8xf32> to vector<16x1xf32>
    %44 = vector.extract_strided_slice %36 {offsets = [0, 6], sizes = [16, 1], strides = [1, 1]} : vector<16x8xf32> to vector<16x1xf32>
    %45 = vector.extract_strided_slice %36 {offsets = [0, 7], sizes = [16, 1], strides = [1, 1]} : vector<16x8xf32> to vector<16x1xf32>
    %46 = vector.extract_strided_slice %37 {offsets = [0, 0], sizes = [1, 128], strides = [1, 1]} : vector<8x128xf32> to vector<1x128xf32>
    %47 = vector.extract_strided_slice %37 {offsets = [1, 0], sizes = [1, 128], strides = [1, 1]} : vector<8x128xf32> to vector<1x128xf32>
    %48 = vector.extract_strided_slice %37 {offsets = [2, 0], sizes = [1, 128], strides = [1, 1]} : vector<8x128xf32> to vector<1x128xf32>
    %49 = vector.extract_strided_slice %37 {offsets = [3, 0], sizes = [1, 128], strides = [1, 1]} : vector<8x128xf32> to vector<1x128xf32>
    %50 = vector.extract_strided_slice %37 {offsets = [4, 0], sizes = [1, 128], strides = [1, 1]} : vector<8x128xf32> to vector<1x128xf32>
    %51 = vector.extract_strided_slice %37 {offsets = [5, 0], sizes = [1, 128], strides = [1, 1]} : vector<8x128xf32> to vector<1x128xf32>
    %52 = vector.extract_strided_slice %37 {offsets = [6, 0], sizes = [1, 128], strides = [1, 1]} : vector<8x128xf32> to vector<1x128xf32>
    %53 = vector.extract_strided_slice %37 {offsets = [7, 0], sizes = [1, 128], strides = [1, 1]} : vector<8x128xf32> to vector<1x128xf32>
    %54 = vector.broadcast %38 : vector<16x1xf32> to vector<16x128xf32>
    %55 = vector.broadcast %46 : vector<1x128xf32> to vector<16x128xf32>
    %56 = arith.subf %54, %55 : vector<16x128xf32>
    %57 = math.absf %56 : vector<16x128xf32>
    %58 = vector.broadcast %39 : vector<16x1xf32> to vector<16x128xf32>
    %59 = vector.broadcast %47 : vector<1x128xf32> to vector<16x128xf32>
    %60 = arith.subf %58, %59 : vector<16x128xf32>
    %61 = math.absf %60 : vector<16x128xf32>
    %62 = arith.addf %57, %61 : vector<16x128xf32>
    %63 = vector.broadcast %40 : vector<16x1xf32> to vector<16x128xf32>
    %64 = vector.broadcast %48 : vector<1x128xf32> to vector<16x128xf32>
    %65 = arith.subf %63, %64 : vector<16x128xf32>
    %66 = math.absf %65 : vector<16x128xf32>
    %67 = arith.addf %62, %66 : vector<16x128xf32>
    %68 = vector.broadcast %41 : vector<16x1xf32> to vector<16x128xf32>
    %69 = vector.broadcast %49 : vector<1x128xf32> to vector<16x128xf32>
    %70 = arith.subf %68, %69 : vector<16x128xf32>
    %71 = math.absf %70 : vector<16x128xf32>
    %72 = arith.addf %67, %71 : vector<16x128xf32>
    %cst_18 = arith.constant 1.000000e+00 : f32
    %73 = vector.broadcast %cst_18 : f32 to vector<16x128xf32>
    %74 = arith.mulf %73, %72 : vector<16x128xf32>
    %75 = arith.addf %35, %74 : vector<16x128xf32>
    %76 = arith.mulf %40, %41 : vector<16x1xf32>
    %77 = arith.mulf %48, %49 : vector<1x128xf32>
    %78 = vector.broadcast %44 : vector<16x1xf32> to vector<16x128xf32>
    %79 = vector.broadcast %52 : vector<1x128xf32> to vector<16x128xf32>
    %80 = arith.minimumf %78, %79 : vector<16x128xf32>
    %81 = vector.broadcast %42 : vector<16x1xf32> to vector<16x128xf32>
    %82 = vector.broadcast %50 : vector<1x128xf32> to vector<16x128xf32>
    %83 = arith.maximumf %81, %82 : vector<16x128xf32>
    %84 = arith.subf %80, %83 : vector<16x128xf32>
    %cst_19 = arith.constant 0.000000e+00 : f32
    %85 = vector.broadcast %cst_19 : f32 to vector<16x128xf32>
    %86 = arith.maximumf %84, %85 : vector<16x128xf32>
    %87 = vector.broadcast %45 : vector<16x1xf32> to vector<16x128xf32>
    %88 = vector.broadcast %53 : vector<1x128xf32> to vector<16x128xf32>
    %89 = arith.minimumf %87, %88 : vector<16x128xf32>
    %90 = vector.broadcast %43 : vector<16x1xf32> to vector<16x128xf32>
    %91 = vector.broadcast %51 : vector<1x128xf32> to vector<16x128xf32>
    %92 = arith.maximumf %90, %91 : vector<16x128xf32>
    %93 = arith.subf %89, %92 : vector<16x128xf32>
    %cst_20 = arith.constant 0.000000e+00 : f32
    %94 = vector.broadcast %cst_20 : f32 to vector<16x128xf32>
    %95 = arith.maximumf %93, %94 : vector<16x128xf32>
    %96 = arith.mulf %86, %95 : vector<16x128xf32>
    %97 = vector.broadcast %76 : vector<16x1xf32> to vector<16x128xf32>
    %98 = vector.broadcast %77 : vector<1x128xf32> to vector<16x128xf32>
    %99 = arith.addf %97, %98 : vector<16x128xf32>
    %100 = arith.subf %99, %96 : vector<16x128xf32>
    %101 = tpu.reciprocal %100 {approx = true} : vector<16x128xf32> -> vector<16x128xf32>
    %102 = arith.mulf %100, %101 : vector<16x128xf32>
    %cst_21 = arith.constant 2.000000e+00 : f32
    %103 = vector.broadcast %cst_21 : f32 to vector<16x128xf32>
    %104 = arith.subf %103, %102 : vector<16x128xf32>
    %105 = arith.mulf %101, %104 : vector<16x128xf32>
    %106 = arith.mulf %96, %105 : vector<16x128xf32>
    %107 = vector.broadcast %44 : vector<16x1xf32> to vector<16x128xf32>
    %108 = vector.broadcast %52 : vector<1x128xf32> to vector<16x128xf32>
    %109 = arith.maximumf %107, %108 : vector<16x128xf32>
    %110 = vector.broadcast %42 : vector<16x1xf32> to vector<16x128xf32>
    %111 = vector.broadcast %50 : vector<1x128xf32> to vector<16x128xf32>
    %112 = arith.minimumf %110, %111 : vector<16x128xf32>
    %113 = arith.subf %109, %112 : vector<16x128xf32>
    %114 = vector.broadcast %45 : vector<16x1xf32> to vector<16x128xf32>
    %115 = vector.broadcast %53 : vector<1x128xf32> to vector<16x128xf32>
    %116 = arith.maximumf %114, %115 : vector<16x128xf32>
    %117 = vector.broadcast %43 : vector<16x1xf32> to vector<16x128xf32>
    %118 = vector.broadcast %51 : vector<1x128xf32> to vector<16x128xf32>
    %119 = arith.minimumf %117, %118 : vector<16x128xf32>
    %120 = arith.subf %116, %119 : vector<16x128xf32>
    %121 = arith.mulf %113, %120 : vector<16x128xf32>
    %122 = tpu.reciprocal %121 {approx = true} : vector<16x128xf32> -> vector<16x128xf32>
    %123 = arith.mulf %121, %122 : vector<16x128xf32>
    %cst_22 = arith.constant 2.000000e+00 : f32
    %124 = vector.broadcast %cst_22 : f32 to vector<16x128xf32>
    %125 = arith.subf %124, %123 : vector<16x128xf32>
    %126 = arith.mulf %122, %125 : vector<16x128xf32>
    %127 = arith.subf %121, %100 : vector<16x128xf32>
    %128 = arith.mulf %127, %126 : vector<16x128xf32>
    %129 = arith.subf %106, %128 : vector<16x128xf32>
    %cst_23 = arith.constant 1.000000e+00 : f32
    %130 = vector.broadcast %cst_23 : f32 to vector<16x128xf32>
    %131 = arith.mulf %130, %129 : vector<16x128xf32>
    %132 = arith.subf %75, %131 : vector<16x128xf32>
    %c0_24 = arith.constant 0 : index
    %c0_25 = arith.constant 0 : index
    %133 = vector.load %arg6[%c0_24, %c0_25] : memref<16x128xf32, #tpu.memory_space<vmem>>, vector<16x128xf32>
    tpu.vector_store %arg6[%c0_24, %c0_25], %132 {strides = array<i32>} : memref<16x128xf32, #tpu.memory_space<vmem>>, vector<16x128xf32>,
    return
  }
  func.func @transform_0(%arg0: i32, %arg1: i32) -> (i32, i32) {
    %c0_i32 = arith.constant 0 : i32
    %c0_i32_0 = arith.constant 0 : i32
    return %arg0, %c0_i32 : i32, i32
  }
  func.func @transform_1(%arg0: i32, %arg1: i32) -> (i32, i32) {
    %c0_i32 = arith.constant 0 : i32
    %c0_i32_0 = arith.constant 0 : i32
    return %arg0, %c0_i32 : i32, i32
  }
  func.func @transform_2(%arg0: i32, %arg1: i32) -> (i32, i32) {
    %c0_i32 = arith.constant 0 : i32
    %c0_i32_0 = arith.constant 0 : i32
    return %c0_i32, %arg1 : i32, i32
  }
  func.func @transform_3(%arg0: i32, %arg1: i32) -> (i32, i32) {
    %c0_i32 = arith.constant 0 : i32
    %c0_i32_0 = arith.constant 0 : i32
    return %c0_i32, %arg1 : i32, i32
  }
  func.func @transform_4(%arg0: i32, %arg1: i32) -> (i32, i32) {
    %c0_i32 = arith.constant 0 : i32
    return %arg0, %arg1 : i32, i32
  }
}

</mosaic_0001>

<llo_original>
// kernel: tpu_custom_call.1
$region0: #{tpu_custom_call.1}
  #allocation0 [shape = 'u32[]', space=smem, size = 0x4, offset = 0x4, fixed_abs, tag = 'smem constant byte address 0x4 - core index']
  #allocation1 [shape = 'u32[144,128]{1,0:T(1,128)}', space=vmem, size = 0x12000, scoped, tag = 'internal scratch']
  %s0 = inlined_call_operand.vmem [shape: f32[16,32], index: 0, kind: input, shape index: {}]
  %s1 = inlined_call_operand.vmem [shape: f32[16,8], index: 1, kind: input, shape index: {}]
  %s2 = inlined_call_operand.hbm [shape: f32[32,128], index: 2, kind: input, shape index: {}]
  %s3 = inlined_call_operand.vmem [shape: f32[8,128], index: 3, kind: input, shape index: {}]
  %s4 = inlined_call_operand.hbm [shape: f32[16,128], index: 4, kind: output, shape index: {}]
  %s5 = sld [smem:[#allocation0]]
  $region30: #{tpu_custom_call.1} parent=0
    _
  %s7 = ssub.s32 1, %s5
  %s8 = scalar_select 0, %s7, %s5
  $region1: #{tpu_custom_call.1} parent=0
    #allocation2 [shape = 'u8[16384]{0}', space=vmem, size = 0x4000, scoped, tag = 'input window, operand 2, single buffered']
    #allocation3 [shape = 's32[1]{0}', space=sflag, size = 0x4, scoped, tag = 'scoped memory for tpu_custom_call.1']
    #allocation4 [shape = 's32[1]{0}', space=sflag, size = 0x4, scoped, tag = 'scoped memory for tpu_custom_call.1']
    #allocation5 [shape = 'u8[8192]{0}', space=vmem, size = 0x2000, scoped, tag = 'output window, operand 0, single buffered']
    %9 = vsyncpa [#allocation3], 0
    %10 = vsyncpa [#allocation4], 0
    // Predicated region
    $region2: #{tpu_custom_call.1} parent=1 // pred_check
      _
    $region3: #{tpu_custom_call.1} parent=1 // pred_check_branch
      %12 = sbr.rel (0) target = $region5
    $region4: #{tpu_custom_call.1} parent=1 // pred_region
      _
    $region5: #{tpu_custom_call.1} parent=1 // pred_fallthru
      _
    // Predicated region
    $region6: #{tpu_custom_call.1} parent=1 // pred_check
      _
    $region7: #{tpu_custom_call.1} parent=1 // pred_check_branch
      %14 = sbr.rel (0) target = $region9
    $region8: #{tpu_custom_call.1} parent=1 // pred_region
      _
    $region9: #{tpu_custom_call.1} parent=1 // pred_fallthru
      _
    // Predicated region
    $region10: #{tpu_custom_call.1} parent=1 // pred_check
      _
    $region11: #{tpu_custom_call.1} parent=1 // pred_check_branch
      %16 = sbr.rel (0) target = $region13
    $region12: #{tpu_custom_call.1} parent=1 // pred_region
      %s18 = ssub.s32 512, 512
      %19 = vsyncadd [#allocation3], %s18
      %s20 = sshll.u32 [#allocation2], 4
      %s21 = int_to_ptr.vmem [resolvable:$true] %s20
      %26 = dma.hbm_to_vmem [thread:$0]  %s2, 512, %s21, [#allocation3], 128, 128, 8
    $region13: #{tpu_custom_call.1} parent=1 // pred_fallthru
      _
    // Predicated region
    $region14: #{tpu_custom_call.1} parent=1 // pred_check
      _
    $region15: #{tpu_custom_call.1} parent=1 // pred_check_branch
      %28 = sbr.rel (0) target = $region17
    $region16: #{tpu_custom_call.1} parent=1 // pred_region
      _
    $region17: #{tpu_custom_call.1} parent=1 // pred_fallthru
      _
    // Predicated region
    $region18: #{tpu_custom_call.1} parent=1 // pred_check
      _
    $region19: #{tpu_custom_call.1} parent=1 // pred_check_branch
      %30 = sbr.rel (0) target = $region21
    $region20: #{tpu_custom_call.1} parent=1 // pred_region
      %31 = dma.done [#allocation3], 512
    $region21: #{tpu_custom_call.1} parent=1 // pred_fallthru
      _
    %v32 = vld [vmem:[%s0] sm:$0xff]
    %v33 = vld [vmem:[%s0 + $0x8] sm:$0xff]
    %v34 = vand.u32 2147483647, %v32
    %v35 = vand.u32 2147483647, %v33
    %v36 = vsub.f32 0.0, %v34
    %v37 = vsub.f32 0.0, %v35
    %v38 = vmul.f32 %v36, 1.442695
    %v39 = vpow.pop %v38
    %v40 = vmul.f32 %v37, 1.442695
    %v41 = vpow.pop %v40
    %v42 = vadd.f32 %v39, 1.0
    %v43 = vadd.f32 %v41, 1.0
    %v44 = vrcp.pop %v42
    %v45 = vmul.f32 1.0, %v44
    %v46 = vrcp.pop %v43
    %v47 = vmul.f32 1.0, %v46
    %vm48 = vcmp.ge.f32.partialorder %v32, 0.0
    %vm49 = vcmp.ge.f32.partialorder %v33, 0.0
    %v50 = vsub.f32 1.0, %v45
    %v51 = vsub.f32 1.0, %v47
    %v52 = vsel %vm48, %v45, %v50
    %v53 = vsel %vm49, %v47, %v51
    %v54 = vmin.f32 %v32, 0.0
    %v55 = vmin.f32 %v33, 0.0
    %v56 = vlog2.pop %v42
    %v57 = vmul.f32 %v56, 0.6931472
    %v58 = vlog2.pop %v43
    %v59 = vmul.f32 %v58, 0.6931472
    %v60 = vsub.f32 %v54, %v57
    %v61 = vsub.f32 %v55, %v59
    %v62 = vsub.f32 %v60, %v32
    %v63 = vsub.f32 %v61, %v33
    %v64 = vsub.f32 1.0, %v52
    %v65 = vsub.f32 1.0, %v53
    %v66 = vmul.f32 %v64, %v64
    %v67 = vmul.f32 %v65, %v65
    %v68 = vmul.f32 %v66, 0.25
    %v69 = vmul.f32 %v67, 0.25
    %v70 = vsub.f32 0.0, %v60
    %v71 = vsub.f32 0.0, %v61
    %v72 = vmul.f32 %v68, %v70
    %v73 = vmul.f32 %v69, %v71
    %v74 = vmul.f32 %v52, %v52
    %v75 = vmul.f32 %v53, %v53
    %v76 = vmul.f32 %v74, 0.75
    %v77 = vmul.f32 %v75, 0.75
    %v78 = vmul.f32 %v76, %v62
    %v79 = vmul.f32 %v77, %v63
    %v80 = vadd.f32 %v72, %v78
    %v81 = vadd.f32 %v73, %v79
    %v82 = vld [vmem:[#allocation2] sm:$0xff]
    %v83 = vld [vmem:[#allocation2 + $0x8] sm:$0xff]
    %v84 = vld [vmem:[#allocation2 + $0x10] sm:$0xff]
    %v85 = vld [vmem:[#allocation2 + $0x18] sm:$0xff]
    %v86 = vld [vmem:[%s1] sm:$0xff]
    %v87 = vld [vmem:[%s1 + $0x8] sm:$0xff]
    %v88 = vld [vmem:[%s3] sm:$0xff]
    %90 = vset.pattern.permute.xlu0 0
    %91 = vperm.xlu0 %90, %v86
    %v92 = vpop.permute.xlu0 %91
    %95 = vset.pattern.permute.xlu0 0
    %96 = vperm.xlu0 %95, %v87
    %v97 = vpop.permute.xlu0 %96
    %v99 = vlaneseq
    %v100 = vshrl.u32 %v99, 7
    %v101 = vsub.s32 0, %v100
    %v102 = vrot.slane %v88, %v101
    %v103 = vsub.f32 %v92, %v102
    %v104 = vsub.f32 %v97, %v102
    %v105 = vand.u32 2147483647, %v103
    %v106 = vand.u32 2147483647, %v104
    %107 = vset.pattern.permute.xlu0 1
    %108 = vperm.xlu0 %107, %v86
    %v109 = vpop.permute.xlu0 %108
    %111 = vset.pattern.permute.xlu0 1
    %112 = vperm.xlu0 %111, %v87
    %v113 = vpop.permute.xlu0 %112
    %v115 = vlaneseq
    %v116 = vshrl.u32 %v115, 7
    %v117 = vsub.s32 1, %v116
    %v118 = vrot.slane %v88, %v117
    %v119 = vsub.f32 %v109, %v118
    %v120 = vsub.f32 %v113, %v118
    %v121 = vand.u32 2147483647, %v119
    %v122 = vand.u32 2147483647, %v120
    %v123 = vadd.f32 %v105, %v121
    %v124 = vadd.f32 %v106, %v122
    %125 = vset.pattern.permute.xlu0 2
    %126 = vperm.xlu0 %125, %v86
    %v127 = vpop.permute.xlu0 %126
    %129 = vset.pattern.permute.xlu0 2
    %130 = vperm.xlu0 %129, %v87
    %v131 = vpop.permute.xlu0 %130
    %v133 = vlaneseq
    %v134 = vshrl.u32 %v133, 7
    %v135 = vsub.s32 2, %v134
    %v136 = vrot.slane %v88, %v135
    %v137 = vsub.f32 %v127, %v136
    %v138 = vsub.f32 %v131, %v136
    %v139 = vand.u32 2147483647, %v137
    %v140 = vand.u32 2147483647, %v138
    %v141 = vadd.f32 %v123, %v139
    %v142 = vadd.f32 %v124, %v140
    %143 = vset.pattern.permute.xlu0 3
    %144 = vperm.xlu0 %143, %v86
    %v145 = vpop.permute.xlu0 %144
    %147 = vset.pattern.permute.xlu0 3
    %148 = vperm.xlu0 %147, %v87
    %v149 = vpop.permute.xlu0 %148
    %v151 = vlaneseq
    %v152 = vshrl.u32 %v151, 7
    %v153 = vsub.s32 3, %v152
    %v154 = vrot.slane %v88, %v153
    %v155 = vsub.f32 %v145, %v154
    %v156 = vsub.f32 %v149, %v154
    %v157 = vand.u32 2147483647, %v155
    %v158 = vand.u32 2147483647, %v156
    %v159 = vadd.f32 %v141, %v157
    %v160 = vadd.f32 %v142, %v158
    %vm161 = vcmask 261120
    %v163 = vsel %vm161, %v80, 0
    %v166 = vsel %vm161, %v81, 0
    %168 = vmatprep.subr.mxu0 0.0
    %169 = vmatpush1.msra.mxu0 0.0
    %170 = vmatprep.subr.mxu0 0.0
    %171 = vmatpush1.msra.mxu0 0.0
    %172 = vmatprep.subr.mxu0 0.0
    %173 = vmatpush1.msra.mxu0 0.0
    %174 = vmatprep.subr.mxu0 0.0
    %175 = vmatpush1.msra.mxu0 0.0
    %176 = vmatprep.subr.mxu0 0.0
    %177 = vmatpush1.msra.mxu0 0.0
    %178 = vmatprep.subr.mxu0 0.0
    %179 = vmatpush1.msra.mxu0 0.0
    %180 = vmatprep.subr.mxu0 0.0
    %181 = vmatpush1.msra.mxu0 0.0
    %182 = vmatprep.subr.mxu0 0.0
    %183 = vmatpush1.msra.mxu0 0.0
    %184 = vmatprep.subr.mxu0 0.0
    %185 = vmatpush1.msra.mxu0 0.0
    %186 = vmatprep.subr.mxu0 0.0
    %187 = vmatpush1.msra.mxu0 0.0
    %188 = vmatprep.subr.mxu0 0.0
    %189 = vmatpush1.msra.mxu0 0.0
    %190 = vmatprep.subr.mxu0 0.0
    %191 = vmatpush1.msra.mxu0 0.0
    %192 = vmatprep.subr.mxu0 0.0
    %v193 = vand.u32 %v85, 4294901760
    %194 = vmatpush1.msra.mxu0 %v193
    %195 = vmatprep.subr.mxu0 0.0
    %v196 = vand.u32 %v84, 4294901760
    %197 = vmatpush1.msra.mxu0 %v196
    %198 = vmatprep.subr.mxu0 0.0
    %v199 = vand.u32 %v83, 4294901760
    %200 = vmatpush1.msra.mxu0 %v199
    %201 = vmatprep.subr.mxu0 0.0
    %v202 = vand.u32 %v82, 4294901760
    %203 = vmatpush1.msra.mxu0 %v202
    %204 = vmatprep.subr.mxu0 0.0
    %205 = vmatpush2.msra.mxu0 0.0
    %206 = vmatprep.subr.mxu0 0.0
    %207 = vmatpush2.msra.mxu0 0.0
    %208 = vmatprep.subr.mxu0 0.0
    %209 = vmatpush2.msra.mxu0 0.0
    %210 = vmatprep.subr.mxu0 0.0
    %211 = vmatpush2.msra.mxu0 0.0
    %212 = vmatprep.subr.mxu0 0.0
    %213 = vmatpush2.msra.mxu0 0.0
    %214 = vmatprep.subr.mxu0 0.0
    %215 = vmatpush2.msra.mxu0 0.0
    %216 = vmatprep.subr.mxu0 0.0
    %217 = vmatpush2.msra.mxu0 0.0
    %218 = vmatprep.subr.mxu0 0.0
    %219 = vmatpush2.msra.mxu0 0.0
    %220 = vmatprep.subr.mxu0 0.0
    %221 = vmatpush2.msra.mxu0 0.0
    %222 = vmatprep.subr.mxu0 0.0
    %223 = vmatpush2.msra.mxu0 0.0
    %224 = vmatprep.subr.mxu0 0.0
    %225 = vmatpush2.msra.mxu0 0.0
    %226 = vmatprep.subr.mxu0 0.0
    %227 = vmatpush2.msra.mxu0 0.0
    %228 = vmatprep.subr.mxu0 0.0
    %229 = vmatpush2.msra.mxu0 0.0
    %230 = vmatprep.subr.mxu0 0.0
    %231 = vmatpush2.msra.mxu0 0.0
    %232 = vmatprep.subr.mxu0 0.0
    %233 = vmatpush2.msra.mxu0 0.0
    %234 = vmatprep.subr.mxu0 0.0
    %235 = vmatpush2.msra.mxu0 0.0
    %236 = vmatprep.mubr.f32.mxu0 0.0
    %v237 = vand.u32 %v163, 4294901760
    %v238 = vsub.f32 %v163, %v237
    %v239 = vand.u32 %v238, 4294901760
    %v240 = vsub.f32 %v238, %v239
    %v241 = vand.u32 %v240, 4294901760
    %242 = vmatmul.mubr.f32.gmra.mxu0 %v241
    %v243 = vpop.f32.mrf.mxu0
    %v244 = vadd.f32 %v159, %v243
    %v245 = vpop.f32.mrf.mxu0
    %246 = vmatprep.mubr.f32.mxu0 0.0
    %v247 = vand.u32 %v166, 4294901760
    %v248 = vsub.f32 %v166, %v247
    %v249 = vand.u32 %v248, 4294901760
    %v250 = vsub.f32 %v248, %v249
    %v251 = vand.u32 %v250, 4294901760
    %252 = vmatmul.mubr.f32.gmra.mxu0 %v251
    %v253 = vpop.f32.mrf.mxu0
    %v254 = vadd.f32 %v160, %v253
    %v255 = vpop.f32.mrf.mxu0
    %256 = vdwg.mxu0
    %257 = vmatprep.subr.mxu0 0.0
    %258 = vmatpush1.msra.mxu0 0.0
    %259 = vmatprep.subr.mxu0 0.0
    %260 = vmatpush1.msra.mxu0 0.0
    %261 = vmatprep.subr.mxu0 0.0
    %262 = vmatpush1.msra.mxu0 0.0
    %263 = vmatprep.subr.mxu0 0.0
    %264 = vmatpush1.msra.mxu0 0.0
    %265 = vmatprep.subr.mxu0 0.0
    %266 = vmatpush1.msra.mxu0 0.0
    %267 = vmatprep.subr.mxu0 0.0
    %268 = vmatpush1.msra.mxu0 0.0
    %269 = vmatprep.subr.mxu0 0.0
    %270 = vmatpush1.msra.mxu0 0.0
    %271 = vmatprep.subr.mxu0 0.0
    %272 = vmatpush1.msra.mxu0 0.0
    %273 = vmatprep.subr.mxu0 0.0
    %274 = vmatpush1.msra.mxu0 0.0
    %275 = vmatprep.subr.mxu0 0.0
    %276 = vmatpush1.msra.mxu0 0.0
    %277 = vmatprep.subr.mxu0 0.0
    %278 = vmatpush1.msra.mxu0 0.0
    %279 = vmatprep.subr.mxu0 0.0
    %280 = vmatpush1.msra.mxu0 0.0
    %281 = vmatprep.subr.mxu0 0.0
    %v282 = vand.u32 %v85, 4294901760
    %v283 = vsub.f32 %v85, %v282
    %v284 = vand.u32 %v283, 4294901760
    %v285 = vsub.f32 %v283, %v284
    %v286 = vand.u32 %v285, 4294901760
    %287 = vmatpush1.msra.mxu0 %v286
    %288 = vmatprep.subr.mxu0 0.0
    %v289 = vand.u32 %v84, 4294901760
    %v290 = vsub.f32 %v84, %v289
    %v291 = vand.u32 %v290, 4294901760
    %v292 = vsub.f32 %v290, %v291
    %v293 = vand.u32 %v292, 4294901760
    %294 = vmatpush1.msra.mxu0 %v293
    %295 = vmatprep.subr.mxu0 0.0
    %v296 = vand.u32 %v83, 4294901760
    %v297 = vsub.f32 %v83, %v296
    %v298 = vand.u32 %v297, 4294901760
    %v299 = vsub.f32 %v297, %v298
    %v300 = vand.u32 %v299, 4294901760
    %301 = vmatpush1.msra.mxu0 %v300
    %302 = vmatprep.subr.mxu0 0.0
    %v303 = vand.u32 %v82, 4294901760
    %v304 = vsub.f32 %v82, %v303
    %v305 = vand.u32 %v304, 4294901760
    %v306 = vsub.f32 %v304, %v305
    %v307 = vand.u32 %v306, 4294901760
    %308 = vmatpush1.msra.mxu0 %v307
    %309 = vmatprep.subr.mxu0 0.0
    %310 = vmatpush2.msra.mxu0 0.0
    %311 = vmatprep.subr.mxu0 0.0
    %312 = vmatpush2.msra.mxu0 0.0
    %313 = vmatprep.subr.mxu0 0.0
    %314 = vmatpush2.msra.mxu0 0.0
    %315 = vmatprep.subr.mxu0 0.0
    %316 = vmatpush2.msra.mxu0 0.0
    %317 = vmatprep.subr.mxu0 0.0
    %318 = vmatpush2.msra.mxu0 0.0
    %319 = vmatprep.subr.mxu0 0.0
    %320 = vmatpush2.msra.mxu0 0.0
    %321 = vmatprep.subr.mxu0 0.0
    %322 = vmatpush2.msra.mxu0 0.0
    %323 = vmatprep.subr.mxu0 0.0
    %324 = vmatpush2.msra.mxu0 0.0
    %325 = vmatprep.subr.mxu0 0.0
    %326 = vmatpush2.msra.mxu0 0.0
    %327 = vmatprep.subr.mxu0 0.0
    %328 = vmatpush2.msra.mxu0 0.0
    %329 = vmatprep.subr.mxu0 0.0
    %330 = vmatpush2.msra.mxu0 0.0
    %331 = vmatprep.subr.mxu0 0.0
    %332 = vmatpush2.msra.mxu0 0.0
    %333 = vmatprep.subr.mxu0 0.0
    %334 = vmatpush2.msra.mxu0 0.0
    %335 = vmatprep.subr.mxu0 0.0
    %336 = vmatpush2.msra.mxu0 0.0
    %337 = vmatprep.subr.mxu0 0.0
    %338 = vmatpush2.msra.mxu0 0.0
    %339 = vmatprep.subr.mxu0 0.0
    %340 = vmatpush2.msra.mxu0 0.0
    %341 = vmatprep.mubr.f32.mxu0 0.0
    %v342 = vand.u32 %v163, 4294901760
    %343 = vmatmul.mubr.f32.gmra.mxu0 %v342
    %v344 = vpop.f32.mrf.mxu0
    %v345 = vadd.f32 %v244, %v344
    %v346 = vpop.f32.mrf.mxu0
    %347 = vmatprep.mubr.f32.mxu0 0.0
    %v348 = vand.u32 %v166, 4294901760
    %349 = vmatmul.mubr.f32.gmra.mxu0 %v348
    %v350 = vpop.f32.mrf.mxu0
    %v351 = vadd.f32 %v254, %v350
    %v352 = vpop.f32.mrf.mxu0
    %353 = vdwg.mxu0
    %354 = vmatprep.subr.mxu0 0.0
    %355 = vmatpush1.msra.mxu0 0.0
    %356 = vmatprep.subr.mxu0 0.0
    %357 = vmatpush1.msra.mxu0 0.0
    %358 = vmatprep.subr.mxu0 0.0
    %359 = vmatpush1.msra.mxu0 0.0
    %360 = vmatprep.subr.mxu0 0.0
    %361 = vmatpush1.msra.mxu0 0.0
    %362 = vmatprep.subr.mxu0 0.0
    %363 = vmatpush1.msra.mxu0 0.0
    %364 = vmatprep.subr.mxu0 0.0
    %365 = vmatpush1.msra.mxu0 0.0
    %366 = vmatprep.subr.mxu0 0.0
    %367 = vmatpush1.msra.mxu0 0.0
    %368 = vmatprep.subr.mxu0 0.0
    %369 = vmatpush1.msra.mxu0 0.0
    %370 = vmatprep.subr.mxu0 0.0
    %371 = vmatpush1.msra.mxu0 0.0
    %372 = vmatprep.subr.mxu0 0.0
    %373 = vmatpush1.msra.mxu0 0.0
    %374 = vmatprep.subr.mxu0 0.0
    %375 = vmatpush1.msra.mxu0 0.0
    %376 = vmatprep.subr.mxu0 0.0
    %377 = vmatpush1.msra.mxu0 0.0
    %378 = vmatprep.subr.mxu0 0.0
    %v379 = vand.u32 %v85, 4294901760
    %v380 = vsub.f32 %v85, %v379
    %381 = vmatpush1.msra.mxu0 %v380
    %382 = vmatprep.subr.mxu0 0.0
    %v383 = vand.u32 %v84, 4294901760
    %v384 = vsub.f32 %v84, %v383
    %385 = vmatpush1.msra.mxu0 %v384
    %386 = vmatprep.subr.mxu0 0.0
    %v387 = vand.u32 %v83, 4294901760
    %v388 = vsub.f32 %v83, %v387
    %389 = vmatpush1.msra.mxu0 %v388
    %390 = vmatprep.subr.mxu0 0.0
    %v391 = vand.u32 %v82, 4294901760
    %v392 = vsub.f32 %v82, %v391
    %393 = vmatpush1.msra.mxu0 %v392
    %394 = vmatprep.subr.mxu0 0.0
    %395 = vmatpush2.msra.mxu0 0.0
    %396 = vmatprep.subr.mxu0 0.0
    %397 = vmatpush2.msra.mxu0 0.0
    %398 = vmatprep.subr.mxu0 0.0
    %399 = vmatpush2.msra.mxu0 0.0
    %400 = vmatprep.subr.mxu0 0.0
    %401 = vmatpush2.msra.mxu0 0.0
    %402 = vmatprep.subr.mxu0 0.0
    %403 = vmatpush2.msra.mxu0 0.0
    %404 = vmatprep.subr.mxu0 0.0
    %405 = vmatpush2.msra.mxu0 0.0
    %406 = vmatprep.subr.mxu0 0.0
    %407 = vmatpush2.msra.mxu0 0.0
    %408 = vmatprep.subr.mxu0 0.0
    %409 = vmatpush2.msra.mxu0 0.0
    %410 = vmatprep.subr.mxu0 0.0
    %411 = vmatpush2.msra.mxu0 0.0
    %412 = vmatprep.subr.mxu0 0.0
    %413 = vmatpush2.msra.mxu0 0.0
    %414 = vmatprep.subr.mxu0 0.0
    %415 = vmatpush2.msra.mxu0 0.0
    %416 = vmatprep.subr.mxu0 0.0
    %417 = vmatpush2.msra.mxu0 0.0
    %418 = vmatprep.subr.mxu0 0.0
    %419 = vmatpush2.msra.mxu0 0.0
    %420 = vmatprep.subr.mxu0 0.0
    %421 = vmatpush2.msra.mxu0 0.0
    %422 = vmatprep.subr.mxu0 0.0
    %423 = vmatpush2.msra.mxu0 0.0
    %424 = vmatprep.subr.mxu0 0.0
    %425 = vmatpush2.msra.mxu0 0.0
    %426 = vmatprep.mubr.f32.mxu0 0.0
    %v427 = vand.u32 %v163, 4294901760
    %v428 = vsub.f32 %v163, %v427
    %429 = vmatmul.mubr.f32.gmra.mxu0 %v428
    %v430 = vpop.f32.mrf.mxu0
    %v431 = vadd.f32 %v345, %v430
    %v432 = vpop.f32.mrf.mxu0
    %433 = vmatprep.mubr.f32.mxu0 0.0
    %v434 = vand.u32 %v166, 4294901760
    %v435 = vsub.f32 %v166, %v434
    %436 = vmatmul.mubr.f32.gmra.mxu0 %v435
    %v437 = vpop.f32.mrf.mxu0
    %v438 = vadd.f32 %v351, %v437
    %v439 = vpop.f32.mrf.mxu0
    %440 = vdwg.mxu0
    %441 = vmatprep.subr.mxu0 0.0
    %442 = vmatpush1.msra.mxu0 0.0
    %443 = vmatprep.subr.mxu0 0.0
    %444 = vmatpush1.msra.mxu0 0.0
    %445 = vmatprep.subr.mxu0 0.0
    %446 = vmatpush1.msra.mxu0 0.0
    %447 = vmatprep.subr.mxu0 0.0
    %448 = vmatpush1.msra.mxu0 0.0
    %449 = vmatprep.subr.mxu0 0.0
    %450 = vmatpush1.msra.mxu0 0.0
    %451 = vmatprep.subr.mxu0 0.0
    %452 = vmatpush1.msra.mxu0 0.0
    %453 = vmatprep.subr.mxu0 0.0
    %454 = vmatpush1.msra.mxu0 0.0
    %455 = vmatprep.subr.mxu0 0.0
    %456 = vmatpush1.msra.mxu0 0.0
    %457 = vmatprep.subr.mxu0 0.0
    %458 = vmatpush1.msra.mxu0 0.0
    %459 = vmatprep.subr.mxu0 0.0
    %460 = vmatpush1.msra.mxu0 0.0
    %461 = vmatprep.subr.mxu0 0.0
    %462 = vmatpush1.msra.mxu0 0.0
    %463 = vmatprep.subr.mxu0 0.0
    %464 = vmatpush1.msra.mxu0 0.0
    %465 = vmatprep.subr.mxu0 0.0
    %v466 = vand.u32 %v85, 4294901760
    %467 = vmatpush1.msra.mxu0 %v466
    %468 = vmatprep.subr.mxu0 0.0
    %v469 = vand.u32 %v84, 4294901760
    %470 = vmatpush1.msra.mxu0 %v469
    %471 = vmatprep.subr.mxu0 0.0
    %v472 = vand.u32 %v83, 4294901760
    %473 = vmatpush1.msra.mxu0 %v472
    %474 = vmatprep.subr.mxu0 0.0
    %v475 = vand.u32 %v82, 4294901760
    %476 = vmatpush1.msra.mxu0 %v475
    %477 = vmatprep.subr.mxu0 0.0
    %478 = vmatpush2.msra.mxu0 0.0
    %479 = vmatprep.subr.mxu0 0.0
    %480 = vmatpush2.msra.mxu0 0.0
    %481 = vmatprep.subr.mxu0 0.0
    %482 = vmatpush2.msra.mxu0 0.0
    %483 = vmatprep.subr.mxu0 0.0
    %484 = vmatpush2.msra.mxu0 0.0
    %485 = vmatprep.subr.mxu0 0.0
    %486 = vmatpush2.msra.mxu0 0.0
    %487 = vmatprep.subr.mxu0 0.0
    %488 = vmatpush2.msra.mxu0 0.0
    %489 = vmatprep.subr.mxu0 0.0
    %490 = vmatpush2.msra.mxu0 0.0
    %491 = vmatprep.subr.mxu0 0.0
    %492 = vmatpush2.msra.mxu0 0.0
    %493 = vmatprep.subr.mxu0 0.0
    %494 = vmatpush2.msra.mxu0 0.0
    %495 = vmatprep.subr.mxu0 0.0
    %496 = vmatpush2.msra.mxu0 0.0
    %497 = vmatprep.subr.mxu0 0.0
    %498 = vmatpush2.msra.mxu0 0.0
    %499 = vmatprep.subr.mxu0 0.0
    %500 = vmatpush2.msra.mxu0 0.0
    %501 = vmatprep.subr.mxu0 0.0
    %502 = vmatpush2.msra.mxu0 0.0
    %503 = vmatprep.subr.mxu0 0.0
    %504 = vmatpush2.msra.mxu0 0.0
    %505 = vmatprep.subr.mxu0 0.0
    %506 = vmatpush2.msra.mxu0 0.0
    %507 = vmatprep.subr.mxu0 0.0
    %508 = vmatpush2.msra.mxu0 0.0
    %509 = vmatprep.mubr.f32.mxu0 0.0
    %v510 = vand.u32 %v163, 4294901760
    %v511 = vsub.f32 %v163, %v510
    %v512 = vand.u32 %v511, 4294901760
    %513 = vmatmul.mubr.f32.gmra.mxu0 %v512
    %v514 = vpop.f32.mrf.mxu0
    %v515 = vadd.f32 %v431, %v514
    %v516 = vpop.f32.mrf.mxu0
    %517 = vmatprep.mubr.f32.mxu0 0.0
    %v518 = vand.u32 %v166, 4294901760
    %v519 = vsub.f32 %v166, %v518
    %v520 = vand.u32 %v519, 4294901760
    %521 = vmatmul.mubr.f32.gmra.mxu0 %v520
    %v522 = vpop.f32.mrf.mxu0
    %v523 = vadd.f32 %v438, %v522
    %v524 = vpop.f32.mrf.mxu0
    %525 = vdwg.mxu0
    %526 = vmatprep.subr.mxu0 0.0
    %527 = vmatpush1.msra.mxu0 0.0
    %528 = vmatprep.subr.mxu0 0.0
    %529 = vmatpush1.msra.mxu0 0.0
    %530 = vmatprep.subr.mxu0 0.0
    %531 = vmatpush1.msra.mxu0 0.0
    %532 = vmatprep.subr.mxu0 0.0
    %533 = vmatpush1.msra.mxu0 0.0
    %534 = vmatprep.subr.mxu0 0.0
    %535 = vmatpush1.msra.mxu0 0.0
    %536 = vmatprep.subr.mxu0 0.0
    %537 = vmatpush1.msra.mxu0 0.0
    %538 = vmatprep.subr.mxu0 0.0
    %539 = vmatpush1.msra.mxu0 0.0
    %540 = vmatprep.subr.mxu0 0.0
    %541 = vmatpush1.msra.mxu0 0.0
    %542 = vmatprep.subr.mxu0 0.0
    %543 = vmatpush1.msra.mxu0 0.0
    %544 = vmatprep.subr.mxu0 0.0
    %545 = vmatpush1.msra.mxu0 0.0
    %546 = vmatprep.subr.mxu0 0.0
    %547 = vmatpush1.msra.mxu0 0.0
    %548 = vmatprep.subr.mxu0 0.0
    %549 = vmatpush1.msra.mxu0 0.0
    %550 = vmatprep.subr.mxu0 0.0
    %v551 = vand.u32 %v85, 4294901760
    %v552 = vsub.f32 %v85, %v551
    %v553 = vand.u32 %v552, 4294901760
    %554 = vmatpush1.msra.mxu0 %v553
    %555 = vmatprep.subr.mxu0 0.0
    %v556 = vand.u32 %v84, 4294901760
    %v557 = vsub.f32 %v84, %v556
    %v558 = vand.u32 %v557, 4294901760
    %559 = vmatpush1.msra.mxu0 %v558
    %560 = vmatprep.subr.mxu0 0.0
    %v561 = vand.u32 %v83, 4294901760
    %v562 = vsub.f32 %v83, %v561
    %v563 = vand.u32 %v562, 4294901760
    %564 = vmatpush1.msra.mxu0 %v563
    %565 = vmatprep.subr.mxu0 0.0
    %v566 = vand.u32 %v82, 4294901760
    %v567 = vsub.f32 %v82, %v566
    %v568 = vand.u32 %v567, 4294901760
    %569 = vmatpush1.msra.mxu0 %v568
    %570 = vmatprep.subr.mxu0 0.0
    %571 = vmatpush2.msra.mxu0 0.0
    %572 = vmatprep.subr.mxu0 0.0
    %573 = vmatpush2.msra.mxu0 0.0
    %574 = vmatprep.subr.mxu0 0.0
    %575 = vmatpush2.msra.mxu0 0.0
    %576 = vmatprep.subr.mxu0 0.0
    %577 = vmatpush2.msra.mxu0 0.0
    %578 = vmatprep.subr.mxu0 0.0
    %579 = vmatpush2.msra.mxu0 0.0
    %580 = vmatprep.subr.mxu0 0.0
    %581 = vmatpush2.msra.mxu0 0.0
    %582 = vmatprep.subr.mxu0 0.0
    %583 = vmatpush2.msra.mxu0 0.0
    %584 = vmatprep.subr.mxu0 0.0
    %585 = vmatpush2.msra.mxu0 0.0
    %586 = vmatprep.subr.mxu0 0.0
    %587 = vmatpush2.msra.mxu0 0.0
    %588 = vmatprep.subr.mxu0 0.0
    %589 = vmatpush2.msra.mxu0 0.0
    %590 = vmatprep.subr.mxu0 0.0
    %591 = vmatpush2.msra.mxu0 0.0
    %592 = vmatprep.subr.mxu0 0.0
    %593 = vmatpush2.msra.mxu0 0.0
    %594 = vmatprep.subr.mxu0 0.0
    %595 = vmatpush2.msra.mxu0 0.0
    %596 = vmatprep.subr.mxu0 0.0
    %597 = vmatpush2.msra.mxu0 0.0
    %598 = vmatprep.subr.mxu0 0.0
    %599 = vmatpush2.msra.mxu0 0.0
    %600 = vmatprep.subr.mxu0 0.0
    %601 = vmatpush2.msra.mxu0 0.0
    %602 = vmatprep.mubr.f32.mxu0 0.0
    %v603 = vand.u32 %v163, 4294901760
    %604 = vmatmul.mubr.f32.gmra.mxu0 %v603
    %v605 = vpop.f32.mrf.mxu0
    %v606 = vadd.f32 %v515, %v605
    %v607 = vpop.f32.mrf.mxu0
    %608 = vmatprep.mubr.f32.mxu0 0.0
    %v609 = vand.u32 %v166, 4294901760
    %610 = vmatmul.mubr.f32.gmra.mxu0 %v609
    %v611 = vpop.f32.mrf.mxu0
    %v612 = vadd.f32 %v523, %v611
    %v613 = vpop.f32.mrf.mxu0
    %614 = vdwg.mxu0
    %615 = vmatprep.subr.mxu0 0.0
    %616 = vmatpush1.msra.mxu0 0.0
    %617 = vmatprep.subr.mxu0 0.0
    %618 = vmatpush1.msra.mxu0 0.0
    %619 = vmatprep.subr.mxu0 0.0
    %620 = vmatpush1.msra.mxu0 0.0
    %621 = vmatprep.subr.mxu0 0.0
    %622 = vmatpush1.msra.mxu0 0.0
    %623 = vmatprep.subr.mxu0 0.0
    %624 = vmatpush1.msra.mxu0 0.0
    %625 = vmatprep.subr.mxu0 0.0
    %626 = vmatpush1.msra.mxu0 0.0
    %627 = vmatprep.subr.mxu0 0.0
    %628 = vmatpush1.msra.mxu0 0.0
    %629 = vmatprep.subr.mxu0 0.0
    %630 = vmatpush1.msra.mxu0 0.0
    %631 = vmatprep.subr.mxu0 0.0
    %632 = vmatpush1.msra.mxu0 0.0
    %633 = vmatprep.subr.mxu0 0.0
    %634 = vmatpush1.msra.mxu0 0.0
    %635 = vmatprep.subr.mxu0 0.0
    %636 = vmatpush1.msra.mxu0 0.0
    %637 = vmatprep.subr.mxu0 0.0
    %638 = vmatpush1.msra.mxu0 0.0
    %639 = vmatprep.subr.mxu0 0.0
    %v640 = vand.u32 %v85, 4294901760
    %641 = vmatpush1.msra.mxu0 %v640
    %642 = vmatprep.subr.mxu0 0.0
    %v643 = vand.u32 %v84, 4294901760
    %644 = vmatpush1.msra.mxu0 %v643
    %645 = vmatprep.subr.mxu0 0.0
    %v646 = vand.u32 %v83, 4294901760
    %647 = vmatpush1.msra.mxu0 %v646
    %648 = vmatprep.subr.mxu0 0.0
    %v649 = vand.u32 %v82, 4294901760
    %650 = vmatpush1.msra.mxu0 %v649
    %651 = vmatprep.subr.mxu0 0.0
    %652 = vmatpush2.msra.mxu0 0.0
    %653 = vmatprep.subr.mxu0 0.0
    %654 = vmatpush2.msra.mxu0 0.0
    %655 = vmatprep.subr.mxu0 0.0
    %656 = vmatpush2.msra.mxu0 0.0
    %657 = vmatprep.subr.mxu0 0.0
    %658 = vmatpush2.msra.mxu0 0.0
    %659 = vmatprep.subr.mxu0 0.0
    %660 = vmatpush2.msra.mxu0 0.0
    %661 = vmatprep.subr.mxu0 0.0
    %662 = vmatpush2.msra.mxu0 0.0
    %663 = vmatprep.subr.mxu0 0.0
    %664 = vmatpush2.msra.mxu0 0.0
    %665 = vmatprep.subr.mxu0 0.0
    %666 = vmatpush2.msra.mxu0 0.0
    %667 = vmatprep.subr.mxu0 0.0
    %668 = vmatpush2.msra.mxu0 0.0
    %669 = vmatprep.subr.mxu0 0.0
    %670 = vmatpush2.msra.mxu0 0.0
    %671 = vmatprep.subr.mxu0 0.0
    %672 = vmatpush2.msra.mxu0 0.0
    %673 = vmatprep.subr.mxu0 0.0
    %674 = vmatpush2.msra.mxu0 0.0
    %675 = vmatprep.subr.mxu0 0.0
    %676 = vmatpush2.msra.mxu0 0.0
    %677 = vmatprep.subr.mxu0 0.0
    %678 = vmatpush2.msra.mxu0 0.0
    %679 = vmatprep.subr.mxu0 0.0
    %680 = vmatpush2.msra.mxu0 0.0
    %681 = vmatprep.subr.mxu0 0.0
    %682 = vmatpush2.msra.mxu0 0.0
    %683 = vmatprep.mubr.f32.mxu0 0.0
    %v684 = vand.u32 %v163, 4294901760
    %685 = vmatmul.mubr.f32.gmra.mxu0 %v684
    %v686 = vpop.f32.mrf.mxu0
    %v687 = vadd.f32 %v606, %v686
    %v688 = vpop.f32.mrf.mxu0
    %689 = vmatprep.mubr.f32.mxu0 0.0
    %v690 = vand.u32 %v166, 4294901760
    %691 = vmatmul.mubr.f32.gmra.mxu0 %v690
    %v692 = vpop.f32.mrf.mxu0
    %v693 = vadd.f32 %v612, %v692
    %v694 = vpop.f32.mrf.mxu0
    %695 = vdwg.mxu0
    %696 = vrot.lane.b32.xlu0 %v86, 127
    %v697 = vpop.permute.xlu0 %696
    %698 = vrot.lane.b32.xlu0 %v87, 127
    %v699 = vpop.permute.xlu0 %698
    %v702 = vmul.f32 %v86, %v697
    %v703 = vmul.f32 %v87, %v699
    %v705 = vrot.slane %v88, 1
    %v707 = vmul.f32 %v88, %v705
    %708 = vset.pattern.permute.xlu0 6
    %709 = vperm.xlu0 %708, %v86
    %v710 = vpop.permute.xlu0 %709
    %712 = vset.pattern.permute.xlu0 6
    %713 = vperm.xlu0 %712, %v87
    %v714 = vpop.permute.xlu0 %713
    %v716 = vlaneseq
    %v717 = vshrl.u32 %v716, 7
    %v718 = vsub.s32 6, %v717
    %v719 = vrot.slane %v88, %v718
    %v720 = vmin.f32 %v710, %v719
    %v721 = vmin.f32 %v714, %v719
    %722 = vset.pattern.permute.xlu0 4
    %723 = vperm.xlu0 %722, %v86
    %v724 = vpop.permute.xlu0 %723
    %726 = vset.pattern.permute.xlu0 4
    %727 = vperm.xlu0 %726, %v87
    %v728 = vpop.permute.xlu0 %727
    %v730 = vlaneseq
    %v731 = vshrl.u32 %v730, 7
    %v732 = vsub.s32 4, %v731
    %v733 = vrot.slane %v88, %v732
    %v734 = vmax.f32 %v724, %v733
    %v735 = vmax.f32 %v728, %v733
    %v736 = vsub.f32 %v720, %v734
    %v737 = vsub.f32 %v721, %v735
    %v738 = vmax.f32 %v736, 0.0
    %v739 = vmax.f32 %v737, 0.0
    %740 = vset.pattern.permute.xlu0 7
    %741 = vperm.xlu0 %740, %v86
    %v742 = vpop.permute.xlu0 %741
    %744 = vset.pattern.permute.xlu0 7
    %745 = vperm.xlu0 %744, %v87
    %v746 = vpop.permute.xlu0 %745
    %v748 = vlaneseq
    %v749 = vshrl.u32 %v748, 7
    %v750 = vsub.s32 7, %v749
    %v751 = vrot.slane %v88, %v750
    %v752 = vmin.f32 %v742, %v751
    %v753 = vmin.f32 %v746, %v751
    %754 = vset.pattern.permute.xlu0 5
    %755 = vperm.xlu0 %754, %v86
    %v756 = vpop.permute.xlu0 %755
    %758 = vset.pattern.permute.xlu0 5
    %759 = vperm.xlu0 %758, %v87
    %v760 = vpop.permute.xlu0 %759
    %v762 = vlaneseq
    %v763 = vshrl.u32 %v762, 7
    %v764 = vsub.s32 5, %v763
    %v765 = vrot.slane %v88, %v764
    %v766 = vmax.f32 %v756, %v765
    %v767 = vmax.f32 %v760, %v765
    %v768 = vsub.f32 %v752, %v766
    %v769 = vsub.f32 %v753, %v767
    %v770 = vmax.f32 %v768, 0.0
    %v771 = vmax.f32 %v769, 0.0
    %v772 = vmul.f32 %v738, %v770
    %v773 = vmul.f32 %v739, %v771
    %775 = vset.pattern.permute.xlu0 2
    %776 = vperm.xlu0 %775, %v702
    %v777 = vpop.permute.xlu0 %776
    %780 = vset.pattern.permute.xlu0 2
    %781 = vperm.xlu0 %780, %v703
    %v782 = vpop.permute.xlu0 %781
    %v784 = vlaneseq
    %v785 = vshrl.u32 %v784, 7
    %v786 = vsub.s32 2, %v785
    %v787 = vrot.slane %v707, %v786
    %v788 = vadd.f32 %v777, %v787
    %v789 = vadd.f32 %v782, %v787
    %v790 = vsub.f32 %v788, %v772
    %v791 = vsub.f32 %v789, %v773
    %v792 = vrcp.pop %v790
    %v793 = vrcp.pop %v791
    %v794 = vmul.f32 %v790, %v792
    %v795 = vmul.f32 %v791, %v793
    %v796 = vsub.f32 2.0, %v794
    %v797 = vsub.f32 2.0, %v795
    %v798 = vmul.f32 %v792, %v796
    %v799 = vmul.f32 %v793, %v797
    %v800 = vmul.f32 %v772, %v798
    %v801 = vmul.f32 %v773, %v799
    %v802 = vmax.f32 %v710, %v719
    %v803 = vmax.f32 %v714, %v719
    %v804 = vmin.f32 %v724, %v733
    %v805 = vmin.f32 %v728, %v733
    %v806 = vsub.f32 %v802, %v804
    %v807 = vsub.f32 %v803, %v805
    %v808 = vmax.f32 %v742, %v751
    %v809 = vmax.f32 %v746, %v751
    %v810 = vmin.f32 %v756, %v765
    %v811 = vmin.f32 %v760, %v765
    %v812 = vsub.f32 %v808, %v810
    %v813 = vsub.f32 %v809, %v811
    %v814 = vmul.f32 %v806, %v812
    %v815 = vmul.f32 %v807, %v813
    %v816 = vrcp.pop %v814
    %v817 = vrcp.pop %v815
    %v818 = vmul.f32 %v814, %v816
    %v819 = vmul.f32 %v815, %v817
    %v820 = vsub.f32 2.0, %v818
    %v821 = vsub.f32 2.0, %v819
    %v822 = vmul.f32 %v816, %v820
    %v823 = vmul.f32 %v817, %v821
    %v824 = vsub.f32 %v814, %v790
    %v825 = vsub.f32 %v815, %v791
    %v826 = vmul.f32 %v824, %v822
    %v827 = vmul.f32 %v825, %v823
    %v828 = vsub.f32 %v800, %v826
    %v829 = vsub.f32 %v801, %v827
    %v830 = vsub.f32 %v687, %v828
    %v831 = vsub.f32 %v693, %v829
    %832 = vst [vmem:[#allocation5] sm:$0xff] %v830
    %833 = vst [vmem:[#allocation5 + $0x8] sm:$0xff] %v831
    // Predicated region
    $region22: #{tpu_custom_call.1} parent=1 // pred_check
      _
    $region23: #{tpu_custom_call.1} parent=1 // pred_check_branch
      %835 = sbr.rel (0) target = $region25
    $region24: #{tpu_custom_call.1} parent=1 // pred_region
      %s837 = ssub.s32 256, 256
      %838 = vsyncadd [#allocation4], %s837
      %s839 = sshll.u32 [#allocation5], 4
      %s840 = int_to_ptr.vmem [resolvable:$true] %s839
      %845 = dma.vmem_to_hbm [thread:$0]  %s840, 256, %s4, [#allocation4], 128, 128, 8
    $region25: #{tpu_custom_call.1} parent=1 // pred_fallthru
      _
    // Predicated region
    $region26: #{tpu_custom_call.1} parent=1 // pred_check
      _
    $region27: #{tpu_custom_call.1} parent=1 // pred_check_branch
      %847 = sbr.rel (0) target = $region29
    $region28: #{tpu_custom_call.1} parent=1 // pred_region
      %848 = dma.done [#allocation4], 256
    $region29: #{tpu_custom_call.1} parent=1 // pred_fallthru
      _
    %849 = vsyncpa [#allocation3], 1
    %850 = vsyncpa [#allocation4], 1

</llo_original>
